<compile_context>
chip_gen: v7x
topology: tpu7x:2x2x1
jax: 0.10.0
libtpu: 0.0.40
codegen_flags: <defaults>
</compile_context>

<pallas_src>
import functools
import math

import jax
import jax.numpy as jnp
from jax.experimental import pallas as pl
from jax.experimental.pallas import tpu as pltpu

BN_EPS = 1e-5


def _linear_bn_kernel(x_ref, w_ref, g_ref, be_ref, out_ref, *, relu):
    # x_ref: (N, K) bf16   w_ref: (K, TN) bf16
    # g_ref / be_ref: (1, TN) f32   out_ref: (N, TN) f32
    y = jnp.dot(x_ref[...], w_ref[...], preferred_element_type=jnp.float32)
    inv_n = 1.0 / y.shape[0]
    # One-pass batch statistics (biased variance, PyTorch BN train-mode).
    mean = jnp.sum(y, axis=0, keepdims=True) * inv_n
    var = jnp.sum(y * y, axis=0, keepdims=True) * inv_n - mean * mean
    # Fused per-feature scale/shift: y*scale + shift == (y-mean)*rsqrt(var+eps)*g + b
    scale = g_ref[...] * jax.lax.rsqrt(var + BN_EPS)
    shift = be_ref[...] - mean * scale
    out = y * scale + shift
    if relu:
        out = jnp.maximum(out, 0.0)
    out_ref[...] = out.astype(out_ref.dtype)


def _pick_tile(d, target=512):
    """Largest 128-multiple tile <= target that divides d; else the full dim."""
    if d % 128 != 0 or d <= target:
        return d
    t = (target // 128) * 128
    while t >= 128:
        if d % t == 0:
            return t
        t -= 128
    return d


def _linear_bn(x, w, gamma, beta, *, relu):
    n, k = x.shape
    d = w.shape[1]
    tn = _pick_tile(d)
    grid = (d // tn,)

    x_bf = x.astype(jnp.bfloat16)
    w_bf = w.astype(jnp.bfloat16)

    cost = pl.CostEstimate(
        flops=2 * n * k * d,
        transcendentals=0,
        bytes_accessed=(x_bf.size * 2 + w_bf.size * 2
                        + (gamma.size + beta.size) * 4 + n * d * 4),
    )

    return pl.pallas_call(
        functools.partial(_linear_bn_kernel, relu=relu),
        out_shape=jax.ShapeDtypeStruct((n, d), jnp.float32),
        grid_spec=pltpu.PrefetchScalarGridSpec(
            num_scalar_prefetch=0,
            grid=grid,
            in_specs=[
                pl.BlockSpec((n, k), lambda j: (0, 0)),    # activations: resident
                pl.BlockSpec((k, tn), lambda j: (0, j)),   # weight slab: streamed
                pl.BlockSpec((1, tn), lambda j: (0, j)),   # gamma
                pl.BlockSpec((1, tn), lambda j: (0, j)),   # beta
            ],
            out_specs=pl.BlockSpec((n, tn), lambda j: (0, j)),
        ),
        compiler_params=pltpu.CompilerParams(
            # Feature tiles are independent (BN stats are per-feature over the
            # full batch inside each tile) -> shard across v7x's two TCs.
            dimension_semantics=("parallel",),
        ),
        cost_estimate=cost,
    )(x_bf, w_bf, gamma, beta)


def projection_mlp(x, params):
    """x: (N, in_dim) f32 -> (N, out_dim) f32, PyTorch train()-mode semantics.

    Linear biases are intentionally NOT passed to the kernels: BatchNorm with
    batch statistics cancels them exactly, so the output is unchanged.
    """
    h = _linear_bn(x, params["w1"], params["g1"], params["be1"], relu=True)
    h = _linear_bn(h, params["w2"], params["g2"], params["be2"], relu=True)
    h = _linear_bn(h, params["w3"], params["g3"], params["be3"], relu=False)
    return h


def init_params(key, in_dim, mid_dim, out_dim):
    """Deterministic init mimicking PyTorch nn.Linear defaults; BN gamma=1, beta=0."""
    def linear(key, fan_in, fan_out):
        kw, kb = jax.random.split(key)
        bound = 1.0 / math.sqrt(fan_in)
        w = jax.random.uniform(kw, (fan_in, fan_out), jnp.float32, -bound, bound)
        b = jax.random.uniform(kb, (1, fan_out), jnp.float32, -bound, bound)
        return w, b

    k1, k2, k3 = jax.random.split(key, 3)
    w1, b1 = linear(k1, in_dim, mid_dim)
    w2, b2 = linear(k2, mid_dim, mid_dim)
    w3, b3 = linear(k3, mid_dim, out_dim)
    return {
        "w1": w1, "b1": b1, "g1": jnp.ones((1, mid_dim), jnp.float32), "be1": jnp.zeros((1, mid_dim), jnp.float32),
        "w2": w2, "b2": b2, "g2": jnp.ones((1, mid_dim), jnp.float32), "be2": jnp.zeros((1, mid_dim), jnp.float32),
        "w3": w3, "b3": b3, "g3": jnp.ones((1, out_dim), jnp.float32), "be3": jnp.zeros((1, out_dim), jnp.float32),
    }


def projection_mlp_ref(x, p):
    """Plain-JAX reference (PyTorch train-mode semantics, WITH Linear biases).

    Matmul inputs are cast to bf16 exactly like the kernel's fast path; the
    bias is included here to demonstrate that BN cancels it.
    """
    def blk(h, w, b, g, be, relu):
        y = jnp.dot(h.astype(jnp.bfloat16), w.astype(jnp.bfloat16),
                    preferred_element_type=jnp.float32) + b
        mean = jnp.mean(y, axis=0, keepdims=True)
        var = jnp.mean((y - mean) ** 2, axis=0, keepdims=True)   # biased
        y = (y - mean) / jnp.sqrt(var + BN_EPS) * g + be
        return jnp.maximum(y, 0.0) if relu else y

    h = blk(x, p["w1"], p["b1"], p["g1"], p["be1"], True)
    h = blk(h, p["w2"], p["b2"], p["g2"], p["be2"], True)
    h = blk(h, p["w3"], p["b3"], p["g3"], p["be3"], False)
    return h


if __name__ == "__main__":
    key = jax.random.PRNGKey(0)
    k_x, k_p = jax.random.split(key)

    batch, in_dim, mid_dim, out_dim = 8, 32, 64, 32
    x = jax.random.normal(k_x, (batch, in_dim), jnp.float32)
    params = init_params(k_p, in_dim, mid_dim, out_dim)

    out = jax.block_until_ready(projection_mlp(x, params))
    ref = projection_mlp_ref(x, params)

    assert out.shape == (batch, out_dim)
    assert jnp.allclose(out, ref, atol=5e-4, rtol=5e-4), "mismatch vs reference"

    print("KERNEL_OK")
</pallas_src>

<mosaic_0001>
module attributes {stable_mosaic.version = 11 : i64} {
  func.func @_linear_bn_kernel(%arg0: i32, %arg1: memref<8x32xbf16, #tpu.memory_space<vmem>>, %arg2: memref<32x64xbf16, #tpu.memory_space<vmem>>, %arg3: memref<1x64xf32, #tpu.memory_space<vmem>>, %arg4: memref<1x64xf32, #tpu.memory_space<vmem>>, %arg5: memref<8x64xf32, #tpu.memory_space<vmem>>) attributes {dimension_semantics = [#tpu.dimension_semantics<parallel>], iteration_bounds = array<i64: 1>, scalar_prefetch = 0 : i64, scratch_operands = 0 : i64, tpu.core_type = #tpu.core_type<tc>, window_params = [{pipeline_mode = #tpu.pipeline_mode<synchronous>, transform_indices = @transform_0, window_bounds = array<i64: 8, 32>}, {transform_indices = @transform_1, window_bounds = array<i64: 32, 64>}, {transform_indices = @transform_2, window_bounds = array<i64: 1, 64>}, {transform_indices = @transform_3, window_bounds = array<i64: 1, 64>}, {transform_indices = @transform_4, window_bounds = array<i64: 8, 64>}]} {
    %c0 = arith.constant 0 : index
    %c0_0 = arith.constant 0 : index
    %0 = vector.load %arg1[%c0, %c0_0] : memref<8x32xbf16, #tpu.memory_space<vmem>>, vector<8x32xbf16>
    %c0_1 = arith.constant 0 : index
    %c0_2 = arith.constant 0 : index
    %1 = vector.load %arg2[%c0_1, %c0_2] : memref<32x64xbf16, #tpu.memory_space<vmem>>, vector<32x64xbf16>
    %cst = arith.constant dense<0.000000e+00> : vector<8x64xf32>
    %2 = tpu.matmul %0, %1, %cst {dimension_numbers = #tpu.dot_dimension_numbers<[1], [0], [0], [1], [0, 0, 1, 1], [], []>} : vector<8x32xbf16>, vector<32x64xbf16>, vector<8x64xf32> -> vector<8x64xf32>
    %cst_3 = arith.constant dense<0.000000e+00> : vector<64xf32>
    %3 = vector.multi_reduction <add>, %2, %cst_3 [0] : vector<8x64xf32> to vector<64xf32>
    %4 = vector.shape_cast %3 : vector<64xf32> to vector<1x64xf32>
    %cst_4 = arith.constant 1.250000e-01 : f32
    %5 = vector.broadcast %cst_4 : f32 to vector<1x64xf32>
    %6 = arith.mulf %4, %5 : vector<1x64xf32>
    %7 = arith.mulf %2, %2 : vector<8x64xf32>
    %cst_5 = arith.constant dense<0.000000e+00> : vector<64xf32>
    %8 = vector.multi_reduction <add>, %7, %cst_5 [0] : vector<8x64xf32> to vector<64xf32>
    %9 = vector.shape_cast %8 : vector<64xf32> to vector<1x64xf32>
    %cst_6 = arith.constant 1.250000e-01 : f32
    %10 = vector.broadcast %cst_6 : f32 to vector<1x64xf32>
    %11 = arith.mulf %9, %10 : vector<1x64xf32>
    %12 = arith.mulf %6, %6 : vector<1x64xf32>
    %13 = arith.subf %11, %12 : vector<1x64xf32>
    %c0_7 = arith.constant 0 : index
    %c0_8 = arith.constant 0 : index
    %14 = vector.load %arg3[%c0_7, %c0_8] : memref<1x64xf32, #tpu.memory_space<vmem>>, vector<1x64xf32>
    %cst_9 = arith.constant 9.99999974E-6 : f32
    %15 = vector.broadcast %cst_9 : f32 to vector<1x64xf32>
    %16 = arith.addf %13, %15 : vector<1x64xf32>
    %17 = math.rsqrt %16 : vector<1x64xf32>
    %18 = arith.mulf %14, %17 : vector<1x64xf32>
    %c0_10 = arith.constant 0 : index
    %c0_11 = arith.constant 0 : index
    %19 = vector.load %arg4[%c0_10, %c0_11] : memref<1x64xf32, #tpu.memory_space<vmem>>, vector<1x64xf32>
    %20 = arith.mulf %6, %18 : vector<1x64xf32>
    %21 = arith.subf %19, %20 : vector<1x64xf32>
    %22 = vector.broadcast %18 : vector<1x64xf32> to vector<8x64xf32>
    %23 = arith.mulf %2, %22 : vector<8x64xf32>
    %24 = vector.broadcast %21 : vector<1x64xf32> to vector<8x64xf32>
    %25 = arith.addf %23, %24 : vector<8x64xf32>
    %cst_12 = arith.constant 0.000000e+00 : f32
    %26 = vector.broadcast %cst_12 : f32 to vector<8x64xf32>
    %27 = arith.maximumf %25, %26 : vector<8x64xf32>
    %c0_13 = arith.constant 0 : index
    %c0_14 = arith.constant 0 : index
    %28 = vector.load %arg5[%c0_13, %c0_14] : memref<8x64xf32, #tpu.memory_space<vmem>>, vector<8x64xf32>
    tpu.vector_store %arg5[%c0_13, %c0_14], %27 {strides = array<i32>} : memref<8x64xf32, #tpu.memory_space<vmem>>, vector<8x64xf32>,
    return
  }
  func.func @transform_0(%arg0: i32) -> (i32, i32) {
    %c0_i32 = arith.constant 0 : i32
    %c0_i32_0 = arith.constant 0 : i32
    %c0_i32_1 = arith.constant 0 : i32
    return %c0_i32, %c0_i32_0 : i32, i32
  }
  func.func @transform_1(%arg0: i32) -> (i32, i32) {
    %c0_i32 = arith.constant 0 : i32
    %c0_i32_0 = arith.constant 0 : i32
    return %c0_i32, %arg0 : i32, i32
  }
  func.func @transform_2(%arg0: i32) -> (i32, i32) {
    %c0_i32 = arith.constant 0 : i32
    %c0_i32_0 = arith.constant 0 : i32
    return %c0_i32, %arg0 : i32, i32
  }
  func.func @transform_3(%arg0: i32) -> (i32, i32) {
    %c0_i32 = arith.constant 0 : i32
    %c0_i32_0 = arith.constant 0 : i32
    return %c0_i32, %arg0 : i32, i32
  }
  func.func @transform_4(%arg0: i32) -> (i32, i32) {
    %c0_i32 = arith.constant 0 : i32
    %c0_i32_0 = arith.constant 0 : i32
    return %c0_i32, %arg0 : i32, i32
  }
}

</mosaic_0001>

<llo_original>
// kernel: tpu_custom_call.1
$region0: #{tpu_custom_call.1}
  #allocation0 [shape = 'u32[]', space=smem, size = 0x4, offset = 0x4, fixed_abs, tag = 'smem constant byte address 0x4 - core index']
  #allocation1 [shape = 'u32[144,128]{1,0:T(1,128)}', space=vmem, size = 0x12000, scoped, tag = 'internal scratch']
  %s0 = inlined_call_operand.hbm [shape: bf16[8,32], index: 0, kind: input, shape index: {}]
  %s1 = inlined_call_operand.hbm [shape: bf16[32,64], index: 1, kind: input, shape index: {}]
  %s2 = inlined_call_operand.vmem [shape: f32[1,64], index: 2, kind: input, shape index: {}]
  %s3 = inlined_call_operand.vmem [shape: f32[1,64], index: 3, kind: input, shape index: {}]
  %s4 = inlined_call_operand.hbm [shape: f32[8,64], index: 4, kind: output, shape index: {}]
  %s5 = sld [smem:[#allocation0]]
  $region34: #{tpu_custom_call.1} parent=0
    _
  %s7 = ssub.s32 1, %s5
  %s8 = scalar_select 0, %s7, %s5
  $region1: #{tpu_custom_call.1} parent=0
    #allocation2 [shape = 'u8[2048]{0}', space=vmem, size = 0x800, scoped, tag = 'input window, operand 0, single buffered']
    #allocation3 [shape = 's32[1]{0}', space=sflag, size = 0x4, scoped, tag = 'scoped memory for tpu_custom_call.1']
    #allocation4 [shape = 's32[1]{0}', space=sflag, size = 0x4, scoped, tag = 'scoped memory for tpu_custom_call.1']
    #allocation5 [shape = 'u8[8192]{0}', space=vmem, size = 0x2000, scoped, tag = 'input window, operand 1, single buffered']
    #allocation6 [shape = 's32[1]{0}', space=sflag, size = 0x4, scoped, tag = 'scoped memory for tpu_custom_call.1']
    #allocation7 [shape = 'u8[4096]{0}', space=vmem, size = 0x1000, scoped, tag = 'output window, operand 0, single buffered']
    %9 = vsyncpa [#allocation3], 0
    %10 = vsyncpa [#allocation6], 0
    %11 = vsyncpa [#allocation4], 0
    // Predicated region
    $region2: #{tpu_custom_call.1} parent=1 // pred_check
      _
    $region3: #{tpu_custom_call.1} parent=1 // pred_check_branch
      %13 = sbr.rel (0) target = $region5
    $region4: #{tpu_custom_call.1} parent=1 // pred_region
      %s15 = ssub.s32 64, 64
      %16 = vsyncadd [#allocation3], %s15
      %s18 = sshll.u32 [#allocation2], 4
      %s19 = int_to_ptr.vmem [resolvable:$true] %s18
      %21 = dma.hbm_to_vmem [thread:$0]  %s0, 64, %s19, [#allocation3]
    $region5: #{tpu_custom_call.1} parent=1 // pred_fallthru
      _
    // Predicated region
    $region6: #{tpu_custom_call.1} parent=1 // pred_check
      _
    $region7: #{tpu_custom_call.1} parent=1 // pred_check_branch
      %23 = sbr.rel (0) target = $region9
    $region8: #{tpu_custom_call.1} parent=1 // pred_region
      %s25 = ssub.s32 256, 256
      %26 = vsyncadd [#allocation6], %s25
      %s27 = sshll.u32 [#allocation5], 4
      %s28 = int_to_ptr.vmem [resolvable:$true] %s27
      %33 = dma.hbm_to_vmem [thread:$0]  %s1, 256, %s28, [#allocation6], 64, 64, 4
    $region9: #{tpu_custom_call.1} parent=1 // pred_fallthru
      _
    // Predicated region
    $region10: #{tpu_custom_call.1} parent=1 // pred_check
      _
    $region11: #{tpu_custom_call.1} parent=1 // pred_check_branch
      %35 = sbr.rel (0) target = $region13
    $region12: #{tpu_custom_call.1} parent=1 // pred_region
      _
    $region13: #{tpu_custom_call.1} parent=1 // pred_fallthru
      _
    // Predicated region
    $region14: #{tpu_custom_call.1} parent=1 // pred_check
      _
    $region15: #{tpu_custom_call.1} parent=1 // pred_check_branch
      %37 = sbr.rel (0) target = $region17
    $region16: #{tpu_custom_call.1} parent=1 // pred_region
      _
    $region17: #{tpu_custom_call.1} parent=1 // pred_fallthru
      _
    // Predicated region
    $region18: #{tpu_custom_call.1} parent=1 // pred_check
      _
    $region19: #{tpu_custom_call.1} parent=1 // pred_check_branch
      %39 = sbr.rel (0) target = $region21
    $region20: #{tpu_custom_call.1} parent=1 // pred_region
      %40 = dma.done [#allocation3], 64
    $region21: #{tpu_custom_call.1} parent=1 // pred_fallthru
      _
    // Predicated region
    $region22: #{tpu_custom_call.1} parent=1 // pred_check
      _
    $region23: #{tpu_custom_call.1} parent=1 // pred_check_branch
      %42 = sbr.rel (0) target = $region25
    $region24: #{tpu_custom_call.1} parent=1 // pred_region
      %43 = dma.done [#allocation6], 256
    $region25: #{tpu_custom_call.1} parent=1 // pred_fallthru
      _
    %v45 = vld [vmem:[#allocation2] sm:$0xf]
    %v46 = vld [vmem:[#allocation5] sm:$0xf]
    %v47 = vld [vmem:[#allocation5 + $0x4] sm:$0xf]
    %v48 = vld [vmem:[#allocation5 + $0x8] sm:$0xf]
    %v49 = vld [vmem:[#allocation5 + $0xc] sm:$0xf]
    %v54 = vunpack.c.l.b16 %v46
    %v55 = vunpack.c.l.b16 %v47
    %v56 = vunpack.c.l.b16 %v48
    %v57 = vunpack.c.l.b16 %v49
    %v58 = vpack.c.b16 %v55, %v54
    %v59 = vpack.c.b16 %v57, %v56
    %vm62 = vcmask 261120
    %v64 = vsel %vm62, %v45, 0
    %66 = vmatprep.subr.bf16.mxu0 0
    %67 = vmatpush1.bf16.msra.mxu0 %v58
    %68 = vmatprep.subr.bf16.mxu0 0
    %69 = vmatpush1.bf16.msra.mxu0 %v59
    %70 = vmatprep.subr.bf16.mxu0 0
    %71 = vmatpush1.bf16.msra.mxu0 0
    %72 = vmatprep.subr.bf16.mxu0 0
    %73 = vmatpush1.bf16.msra.mxu0 0
    %74 = vmatprep.subr.bf16.mxu0 0
    %75 = vmatpush1.bf16.msra.mxu0 0
    %76 = vmatprep.subr.bf16.mxu0 0
    %77 = vmatpush1.bf16.msra.mxu0 0
    %78 = vmatprep.subr.bf16.mxu0 0
    %79 = vmatpush1.bf16.msra.mxu0 0
    %80 = vmatprep.subr.bf16.mxu0 0
    %81 = vmatpush1.bf16.msra.mxu0 0
    %82 = vmatprep.subr.bf16.mxu0 0
    %83 = vmatpush1.bf16.msra.mxu0 0
    %84 = vmatprep.subr.bf16.mxu0 0
    %85 = vmatpush1.bf16.msra.mxu0 0
    %86 = vmatprep.subr.bf16.mxu0 0
    %87 = vmatpush1.bf16.msra.mxu0 0
    %88 = vmatprep.subr.bf16.mxu0 0
    %89 = vmatpush1.bf16.msra.mxu0 0
    %90 = vmatprep.subr.bf16.mxu0 0
    %91 = vmatpush1.bf16.msra.mxu0 0
    %92 = vmatprep.subr.bf16.mxu0 0
    %93 = vmatpush1.bf16.msra.mxu0 0
    %94 = vmatprep.subr.bf16.mxu0 0
    %95 = vmatpush1.bf16.msra.mxu0 0
    %96 = vmatprep.subr.bf16.mxu0 0
    %97 = vmatpush1.bf16.msra.mxu0 0
    %98 = vmatprep.mubr.bf16.mxu0 0
    %99 = vmatmul.mubr.bf16.gmra.mrb[0].mxu0 %v64
    %v100 = vpop.f32.mrb[0].mxu0
    %v101 = vadd.f32 0.0, %v100
    %v102 = vpop.f32.mrb[0].mxu0
    %v103 = vpop.f32.mrb[0].mxu0
    %v104 = vpop.f32.mrb[0].mxu0
    %105 = vdwg.mxu0
    %vm106 = vcmask 523264
    %v107 = vsel %vm106, %v101, 0.0
    %v108 = vrot.slane %v107, 4
    %v109 = vadd.f32 %v107, %v108
    %v110 = vrot.slane %v109, 2
    %v111 = vadd.f32 %v109, %v110
    %v112 = vrot.slane %v111, 1
    %v113 = vadd.f32 %v111, %v112
    %v114 = vmul.f32 %v113, 0.125
    %v115 = vmul.f32 %v101, %v101
    %v116 = vsel %vm106, %v115, 0.0
    %v117 = vrot.slane %v116, 4
    %v118 = vadd.f32 %v116, %v117
    %v119 = vrot.slane %v118, 2
    %v120 = vadd.f32 %v118, %v119
    %v121 = vrot.slane %v120, 1
    %v122 = vadd.f32 %v120, %v121
    %v123 = vmul.f32 %v122, 0.125
    %v124 = vmul.f32 %v114, %v114
    %v125 = vsub.f32 %v123, %v124
    %v126 = vld [vmem:[%s2] sm:$0x1]
    %v127 = vadd.f32 %v125, 1e-05
    %v128 = vrsqrt.pop %v127
    %v129 = vmul.f32 %v126, %v128
    %v130 = vld [vmem:[%s3] sm:$0x1]
    %v131 = vmul.f32 %v114, %v129
    %v132 = vsub.f32 %v130, %v131
    %v134 = vlaneseq
    %v135 = vshrl.u32 %v134, 7
    %v136 = vsub.s32 0, %v135
    %v137 = vrot.slane %v129, %v136
    %v139 = vmul.f32 %v101, %v137
    %v141 = vlaneseq
    %v142 = vshrl.u32 %v141, 7
    %v143 = vsub.s32 0, %v142
    %v144 = vrot.slane %v132, %v143
    %v146 = vadd.f32 %v139, %v144
    %v147 = vmax.f32 %v146, 0.0
    %148 = vst.msk [vmem:[#allocation7] sm:$0xff] %vm106, %v147
    // Predicated region
    $region26: #{tpu_custom_call.1} parent=1 // pred_check
      _
    $region27: #{tpu_custom_call.1} parent=1 // pred_check_branch
      %150 = sbr.rel (0) target = $region29
    $region28: #{tpu_custom_call.1} parent=1 // pred_region
      %s152 = ssub.s32 128, 128
      %153 = vsyncadd [#allocation4], %s152
      %s155 = sshll.u32 [#allocation7], 4
      %s156 = int_to_ptr.vmem [resolvable:$true] %s155
      %158 = dma.vmem_to_hbm [thread:$0]  %s156, 128, %s4, [#allocation4]
    $region29: #{tpu_custom_call.1} parent=1 // pred_fallthru
      _
    // Predicated region
    $region30: #{tpu_custom_call.1} parent=1 // pred_check
      _
    $region31: #{tpu_custom_call.1} parent=1 // pred_check_branch
      %160 = sbr.rel (0) target = $region33
    $region32: #{tpu_custom_call.1} parent=1 // pred_region
      %161 = dma.done [#allocation4], 128
    $region33: #{tpu_custom_call.1} parent=1 // pred_fallthru
      _
    %162 = vsyncpa [#allocation3], 1
    %163 = vsyncpa [#allocation6], 1
    %164 = vsyncpa [#allocation4], 1

</llo_original>
